<compile_context>
chip_gen: v7x
topology: tpu7x:2x2x1
jax: 0.10.0
libtpu: 0.0.40
codegen_flags: <defaults>
</compile_context>

<pallas_src>
import functools

import jax
import jax.numpy as jnp
from jax import lax
from jax.experimental import pallas as pl
from jax.experimental.pallas import tpu as pltpu


def _round_up(n, m):
    return ((n + m - 1) // m) * m


# ---------------------------------------------------------------------------
# Kernel 1: tiled  out = act(x @ w + b)
# Used for 1x1 convs (BN folded) and for the separable bilinear interpolation.
# ---------------------------------------------------------------------------
def _matmul_bias_act_kernel(x_ref, w_ref, b_ref, o_ref, *, relu):
    y = jnp.dot(x_ref[...], w_ref[...], preferred_element_type=jnp.float32)
    y = y + b_ref[...]
    if relu:
        y = jnp.maximum(y, 0.0)
    o_ref[...] = y.astype(o_ref.dtype)


def matmul_bias_act(x2d, w, b, *, relu=False, block_rows=512):
    """out = act(x2d @ w + b), tiled over rows with large lane-dense blocks."""
    rows, cin = x2d.shape
    cout = w.shape[1]
    # Big row tiles (>= hundreds of KiB) amortize the ~0.35us per-step cost;
    # no divisibility assert: pad rows in the wrapper and slice the result.
    br = min(block_rows, _round_up(rows, 8))
    rows_p = _round_up(rows, br)
    if rows_p != rows:
        x2d = jnp.pad(x2d, ((0, rows_p - rows), (0, 0)))
    out = pl.pallas_call(
        functools.partial(_matmul_bias_act_kernel, relu=relu),
        out_shape=jax.ShapeDtypeStruct((rows_p, cout), jnp.float32),
        grid=(rows_p // br,),
        in_specs=[
            pl.BlockSpec((br, cin), lambda i: (i, 0)),
            pl.BlockSpec((cin, cout), lambda i: (0, 0)),
            pl.BlockSpec((1, cout), lambda i: (0, 0)),
        ],
        out_specs=pl.BlockSpec((br, cout), lambda i: (i, 0)),
        compiler_params=pltpu.CompilerParams(
            dimension_semantics=("parallel",)),
    )(x2d.astype(jnp.float32), w.astype(jnp.float32),
      b.reshape(1, cout).astype(jnp.float32))
    return out[:rows]


# ---------------------------------------------------------------------------
# Kernel 2: 3x3 conv (stride 1, padding 1) + folded-BN bias + ReLU, NHWC.
# One batch image per grid step; the conv is 9 accumulating MXU matmuls.
# ---------------------------------------------------------------------------
def _conv3x3_bias_relu_kernel(xp_ref, w_ref, b_ref, o_ref, *, H, W):
    cin = xp_ref.shape[-1]
    cout = o_ref.shape[-1]
    acc = jnp.zeros((H * W, cout), jnp.float32)
    for ky in range(3):
        for kx in range(3):
            patch = xp_ref[0, ky:ky + H, kx:kx + W, :].reshape(H * W, cin)
            acc = acc + jnp.dot(patch, w_ref[ky, kx],
                                preferred_element_type=jnp.float32)
    y = jnp.maximum(acc + b_ref[...], 0.0)
    o_ref[...] = y.reshape(1, H, W, cout).astype(o_ref.dtype)


def conv3x3_bn_relu(x_nhwc, w, b):
    """3x3 / stride 1 / pad 1 convolution + (folded) BN + ReLU in NHWC."""
    # TODO(synk): for large spatial extents, tile over output rows with a
    # 2-row halo (pl.Element offsets) so each block stays within VMEM budget.
    B, H, W, cin = x_nhwc.shape
    cout = w.shape[-1]
    xp = jnp.pad(x_nhwc, ((0, 0), (1, 1), (1, 1), (0, 0)))
    return pl.pallas_call(
        functools.partial(_conv3x3_bias_relu_kernel, H=H, W=W),
        out_shape=jax.ShapeDtypeStruct((B, H, W, cout), jnp.float32),
        grid=(B,),
        in_specs=[
            pl.BlockSpec((1, H + 2, W + 2, cin), lambda i: (i, 0, 0, 0)),
            pl.BlockSpec((3, 3, cin, cout), lambda i: (0, 0, 0, 0)),
            pl.BlockSpec((1, cout), lambda i: (0, 0)),
        ],
        out_specs=pl.BlockSpec((1, H, W, cout), lambda i: (i, 0, 0, 0)),
        compiler_params=pltpu.CompilerParams(
            dimension_semantics=("parallel",)),
    )(xp.astype(jnp.float32), w.astype(jnp.float32),
      b.reshape(1, cout).astype(jnp.float32))


# ---------------------------------------------------------------------------
# Bilinear interpolation (align_corners=False) as separable matmuls.
# ---------------------------------------------------------------------------
def _bilinear_matrix(in_size, out_size):
    """Dense (out_size, in_size) matrix matching F.interpolate bilinear,
    align_corners=False."""
    o = jnp.arange(out_size, dtype=jnp.float32)
    src = (o + 0.5) * (in_size / out_size) - 0.5
    src = jnp.clip(src, 0.0, float(in_size - 1))
    i0 = jnp.floor(src).astype(jnp.int32)
    i1 = jnp.minimum(i0 + 1, in_size - 1)
    w1 = src - i0.astype(jnp.float32)
    w0 = 1.0 - w1
    m = jnp.zeros((out_size, in_size), jnp.float32)
    rows = jnp.arange(out_size)
    m = m.at[rows, i0].add(w0)
    m = m.at[rows, i1].add(w1)
    return m


def resize_bilinear_nchw(x, out_h, out_w):
    """Separable bilinear resize; each 1-D interpolation is a Pallas matmul."""
    Bn, C, H, W = x.shape
    if H != out_h:
        A = _bilinear_matrix(H, out_h)                        # (out_h, H)
        xt = jnp.transpose(x, (0, 1, 3, 2)).reshape(-1, H)    # H on lanes
        xt = matmul_bias_act(xt, A.T, jnp.zeros((out_h,), jnp.float32))
        x = jnp.transpose(xt.reshape(Bn, C, W, out_h), (0, 1, 3, 2))
        H = out_h
    if W != out_w:
        Bm = _bilinear_matrix(W, out_w)                       # (out_w, W)
        xf = matmul_bias_act(x.reshape(-1, W), Bm.T,
                             jnp.zeros((out_w,), jnp.float32))
        x = xf.reshape(Bn, C, H, out_w)
    return x


# ---------------------------------------------------------------------------
# BatchNorm folding (inference-mode BN -> per-channel affine inside conv).
# ---------------------------------------------------------------------------
def _fold_bn(w, gamma, beta, mean, var, eps=1e-5):
    scale = gamma / jnp.sqrt(var + eps)          # per output channel
    return w * scale, beta - mean * scale


# ---------------------------------------------------------------------------
# Full DeepLabV3PlusDecoder forward (NCHW in, NCHW out, like PyTorch).
# ---------------------------------------------------------------------------
def deeplabv3plus_decoder(x, x_low, input_shape, params):
    Bn, Cx, Hx, Wx = x.shape
    _, Cl, Hl, Wl = x_low.shape
    out_h, out_w = input_shape

    # 1. upsample x to the low-level feature resolution
    x = resize_bilinear_nchw(x, Hl, Wl)

    # 2. low_level_reduce: 1x1 conv + BN + ReLU (BN folded)
    w_r, b_r = params["reduce_w"], params["reduce_b"]
    xl = jnp.transpose(x_low, (0, 2, 3, 1)).reshape(-1, Cl)
    xl = matmul_bias_act(xl, w_r, b_r, relu=True)
    xl = xl.reshape(Bn, Hl, Wl, w_r.shape[1])

    # 3. concat (x_low, x) along channels, NHWC
    x_nhwc = jnp.transpose(x, (0, 2, 3, 1))
    cat = jnp.concatenate([xl, x_nhwc], axis=-1)

    # 4/5. conv_1 and conv_2: 3x3 conv + BN + ReLU
    y = conv3x3_bn_relu(cat, params["conv1_w"], params["conv1_b"])
    y = conv3x3_bn_relu(y, params["conv2_w"], params["conv2_b"])

    # 6. conv_logits: 1x1 conv with bias (no activation)
    w_l, b_l = params["logits_w"], params["logits_b"]
    z = matmul_bias_act(y.reshape(-1, y.shape[-1]), w_l, b_l, relu=False)
    z = jnp.transpose(z.reshape(Bn, Hl, Wl, w_l.shape[1]), (0, 3, 1, 2))

    # 7. upsample to input_shape
    return resize_bilinear_nchw(z, out_h, out_w)


# ---------------------------------------------------------------------------
# Plain-JAX reference (uses lax.conv / einsum) for correctness checking.
# ---------------------------------------------------------------------------
def _ref_forward(x, x_low, input_shape, params):
    def resize(t, oh, ow):
        _, _, H, W = t.shape
        A = _bilinear_matrix(H, oh)
        Bm = _bilinear_matrix(W, ow)
        return jnp.einsum("oh,bchw,pw->bcop", A, t, Bm)

    def conv3(t, w, b):
        y = lax.conv_general_dilated(
            t, w, window_strides=(1, 1), padding=((1, 1), (1, 1)),
            dimension_numbers=("NHWC", "HWIO", "NHWC"))
        return jnp.maximum(y + b, 0.0)

    x = resize(x, *x_low.shape[-2:])
    xl = jnp.transpose(x_low, (0, 2, 3, 1))
    xl = jnp.maximum(
        jnp.einsum("bhwc,cd->bhwd", xl, params["reduce_w"]) + params["reduce_b"],
        0.0)
    cat = jnp.concatenate([xl, jnp.transpose(x, (0, 2, 3, 1))], axis=-1)
    y = conv3(cat, params["conv1_w"], params["conv1_b"])
    y = conv3(y, params["conv2_w"], params["conv2_b"])
    z = jnp.einsum("bhwc,cd->bhwd", y, params["logits_w"]) + params["logits_b"]
    z = jnp.transpose(z, (0, 3, 1, 2))
    return resize(z, *input_shape)


if __name__ == "__main__":
    key = jax.random.PRNGKey(0)
    ks = jax.random.split(key, 24)

    # Small shapes consistent with the module's forward.
    B = 2
    out_f = 64              # out_f_classifier
    c_low = 32              # in_channels_low
    proj = 48               # projected_filters (fixed at 48 in the module)
    n_out = 6               # num_outputs
    Hx, Wx = 8, 8           # encoder output `x`
    Hl, Wl = 16, 16         # low-level feature `x_low`
    input_shape = (32, 32)  # final output spatial size

    x = jax.random.normal(ks[0], (B, out_f, Hx, Wx), jnp.float32)
    x_low = jax.random.normal(ks[1], (B, c_low, Hl, Wl), jnp.float32)

    def bn_params(kg, kb, km, kv, c):
        return (1.0 + 0.1 * jax.random.normal(kg, (c,), jnp.float32),
                0.1 * jax.random.normal(kb, (c,), jnp.float32),
                0.1 * jax.random.normal(km, (c,), jnp.float32),
                jnp.abs(jax.random.normal(kv, (c,), jnp.float32)) + 0.5)

    # low_level_reduce: 1x1 conv (c_low -> proj) + BN + ReLU (folded)
    w_r = 0.1 * jax.random.normal(ks[2], (c_low, proj), jnp.float32)
    w_r, b_r = _fold_bn(w_r, *bn_params(ks[3], ks[4], ks[5], ks[6], proj))

    # conv_1: 3x3 (proj + out_f -> out_f) + BN + ReLU (folded)
    cin1 = proj + out_f
    w1 = 0.05 * jax.random.normal(ks[7], (3, 3, cin1, out_f), jnp.float32)
    w1, b1 = _fold_bn(w1, *bn_params(ks[8], ks[9], ks[10], ks[11], out_f))

    # conv_2: 3x3 (out_f -> out_f) + BN + ReLU (folded)
    w2 = 0.05 * jax.random.normal(ks[12], (3, 3, out_f, out_f), jnp.float32)
    w2, b2 = _fold_bn(w2, *bn_params(ks[13], ks[14], ks[15], ks[16], out_f))

    # conv_logits: 1x1 conv (out_f -> n_out) with bias
    w_l = 0.1 * jax.random.normal(ks[17], (out_f, n_out), jnp.float32)
    b_l = 0.1 * jax.random.normal(ks[18], (n_out,), jnp.float32)

    params = dict(reduce_w=w_r, reduce_b=b_r,
                  conv1_w=w1, conv1_b=b1,
                  conv2_w=w2, conv2_b=b2,
                  logits_w=w_l, logits_b=b_l)

    out = deeplabv3plus_decoder(x, x_low, input_shape, params)
    out = jax.block_until_ready(out)
    assert out.shape == (B, n_out, input_shape[0], input_shape[1]), out.shape

    ref = jax.block_until_ready(_ref_forward(x, x_low, input_shape, params))
    assert jnp.allclose(out, ref, atol=2e-3, rtol=2e-3), (
        float(jnp.max(jnp.abs(out - ref))))

    print("KERNEL_OK")
</pallas_src>

<mosaic_0001>
module attributes {stable_mosaic.version = 11 : i64} {
  func.func @_matmul_bias_act_kernel(%arg0: i32, %arg1: memref<512x8xf32, #tpu.memory_space<vmem>>, %arg2: memref<8x16xf32, #tpu.memory_space<vmem>>, %arg3: memref<1x16xf32, #tpu.memory_space<vmem>>, %arg4: memref<512x16xf32, #tpu.memory_space<vmem>>) attributes {dimension_semantics = [#tpu.dimension_semantics<parallel>], iteration_bounds = array<i64: 2>, scalar_prefetch = 0 : i64, scratch_operands = 0 : i64, tpu.core_type = #tpu.core_type<tc>, window_params = [{transform_indices = @transform_0, window_bounds = array<i64: 512, 8>}, {pipeline_mode = #tpu.pipeline_mode<synchronous>, transform_indices = @transform_1, window_bounds = array<i64: 8, 16>}, {pipeline_mode = #tpu.pipeline_mode<synchronous>, transform_indices = @transform_2, window_bounds = array<i64: 1, 16>}, {transform_indices = @transform_3, window_bounds = array<i64: 512, 16>}]} {
    %c0 = arith.constant 0 : index
    %c0_0 = arith.constant 0 : index
    %0 = vector.load %arg1[%c0, %c0_0] : memref<512x8xf32, #tpu.memory_space<vmem>>, vector<512x8xf32>
    %c0_1 = arith.constant 0 : index
    %c0_2 = arith.constant 0 : index
    %1 = vector.load %arg2[%c0_1, %c0_2] : memref<8x16xf32, #tpu.memory_space<vmem>>, vector<8x16xf32>
    %cst = arith.constant dense<0.000000e+00> : vector<512x16xf32>
    %2 = tpu.matmul %0, %1, %cst {dimension_numbers = #tpu.dot_dimension_numbers<[1], [0], [0], [1], [0, 0, 1, 1], [], []>} : vector<512x8xf32>, vector<8x16xf32>, vector<512x16xf32> -> vector<512x16xf32>
    %c0_3 = arith.constant 0 : index
    %c0_4 = arith.constant 0 : index
    %3 = vector.load %arg3[%c0_3, %c0_4] : memref<1x16xf32, #tpu.memory_space<vmem>>, vector<1x16xf32>
    %4 = vector.broadcast %3 : vector<1x16xf32> to vector<512x16xf32>
    %5 = arith.addf %2, %4 : vector<512x16xf32>
    %c0_5 = arith.constant 0 : index
    %c0_6 = arith.constant 0 : index
    %6 = vector.load %arg4[%c0_5, %c0_6] : memref<512x16xf32, #tpu.memory_space<vmem>>, vector<512x16xf32>
    tpu.vector_store %arg4[%c0_5, %c0_6], %5 {strides = array<i32>} : memref<512x16xf32, #tpu.memory_space<vmem>>, vector<512x16xf32>,
    return
  }
  func.func @transform_0(%arg0: i32) -> (i32, i32) {
    %c0_i32 = arith.constant 0 : i32
    %c0_i32_0 = arith.constant 0 : i32
    return %arg0, %c0_i32 : i32, i32
  }
  func.func @transform_1(%arg0: i32) -> (i32, i32) {
    %c0_i32 = arith.constant 0 : i32
    %c0_i32_0 = arith.constant 0 : i32
    %c0_i32_1 = arith.constant 0 : i32
    return %c0_i32, %c0_i32_0 : i32, i32
  }
  func.func @transform_2(%arg0: i32) -> (i32, i32) {
    %c0_i32 = arith.constant 0 : i32
    %c0_i32_0 = arith.constant 0 : i32
    %c0_i32_1 = arith.constant 0 : i32
    return %c0_i32, %c0_i32_0 : i32, i32
  }
  func.func @transform_3(%arg0: i32) -> (i32, i32) {
    %c0_i32 = arith.constant 0 : i32
    %c0_i32_0 = arith.constant 0 : i32
    return %arg0, %c0_i32 : i32, i32
  }
}

</mosaic_0001>

<llo_original>
// kernel: tpu_custom_call.1
$region0: #{tpu_custom_call.1}
  #allocation0 [shape = 'u32[]', space=smem, size = 0x4, offset = 0x4, fixed_abs, tag = 'smem constant byte address 0x4 - core index']
  #allocation1 [shape = 'u32[144,128]{1,0:T(1,128)}', space=vmem, size = 0x12000, scoped, tag = 'internal scratch']
  %s0 = inlined_call_operand.vmem [shape: f32[1024,8], index: 0, kind: input, shape index: {}]
  %s1 = inlined_call_operand.vmem [shape: f32[8,16], index: 1, kind: input, shape index: {}]
  %s2 = inlined_call_operand.vmem [shape: f32[1,16], index: 2, kind: input, shape index: {}]
  %s3 = inlined_call_operand.vmem [shape: f32[1024,16], index: 3, kind: output, shape index: {}]
  %s4 = sld [smem:[#allocation0]]
  $region45: #{tpu_custom_call.1} parent=0
    _
  %s6 = ssub.s32 1, %s4
  %s7 = scalar_select 0, %s6, %s4
  loop: start=0, step=1, limit=4
  $region2: #{tpu_custom_call.1} parent=0 // loop_pre_header
    _
  $region3: #{tpu_custom_call.1} parent=0 // loop_header
    %s9 = sphi 0, %s13
    %p10 = scmp.ge.s32.totalorder %s9, 4
    %s19 = sphi 0, %s21
    %s22 = sphi 0, %s19
    %s23 = sphi 0, %s22
    %s39 = sphi 0, %s23
    %s43 = sphi 0, %s43
    %s45 = sphi 0, %s43
    %s46 = sphi 0, %s45
    %s60 = sphi 0, %s46
    %s64 = sphi 0, %s64
    %s66 = sphi 0, %s64
    %s67 = sphi 0, %s66
    %s81 = sphi 0, %s67
    %s87 = sphi 0, %s89
    %s90 = sphi 0, %s87
    %s91 = sphi 0, %s90
    %s107 = sphi 0, %s91
  $region4: #{tpu_custom_call.1} parent=0 // loop_header_branch
    %12 = sbr.rel (%p10) target = $region8
  $region5: #{tpu_custom_call.1} parent=0 // loop_body
    %s14 = ssub.s32 %s9, 1
    %s15 = ssub.s32 %s9, 2
    %s16 = sadd.s32 %s9, 1
    %s17 = ssub.s32 %s9, %s16
    %p18 = scmp.eq.s32.totalorder %s17, 0
    %s20 = sadd.s32 %s19, 1
    %s21 = scalar_select %p18, %s19, %s20
    %p24 = pneg %p18
    %p25 = scmp.eq.s32.totalorder %s9, 1
    %p26 = por %p24, %p25
    %p27 = scmp.ne.s32.totalorder %s19, %s22
    %p28 = scmp.eq.s32.totalorder %s9, 0
    %p29 = por %p27, %p28
    %p30 = scmp.ne.s32.totalorder %s19, %s22
    %p31 = scmp.eq.s32.totalorder %s14, 1
    %p32 = por %p30, %p31
    %p33 = scmp.ne.s32.totalorder %s22, %s23
    %p34 = scmp.eq.s32.totalorder %s14, 0
    %p35 = por %p33, %p34
    %p36 = scmp.ne.s32.totalorder %s22, %s23
    %p37 = scmp.eq.s32.totalorder %s15, 1
    %p38 = por %p36, %p37
    %p40 = scmp.ne.s32.totalorder %s23, %s39
    %p41 = scmp.eq.s32.totalorder %s15, 0
    %p42 = por %p40, %p41
    %s44 = sadd.s32 %s43, 1
    %p47 = scmp.eq.s32.totalorder %s9, 1
    %p48 = scmp.ne.s32.totalorder %s43, %s45
    %p49 = scmp.eq.s32.totalorder %s9, 0
    %p50 = por %p48, %p49
    %p51 = scmp.ne.s32.totalorder %s43, %s45
    %p52 = scmp.eq.s32.totalorder %s14, 1
    %p53 = por %p51, %p52
    %p54 = scmp.ne.s32.totalorder %s45, %s46
    %p55 = scmp.eq.s32.totalorder %s14, 0
    %p56 = por %p54, %p55
    %p57 = scmp.ne.s32.totalorder %s45, %s46
    %p58 = scmp.eq.s32.totalorder %s15, 1
    %p59 = por %p57, %p58
    %p61 = scmp.ne.s32.totalorder %s46, %s60
    %p62 = scmp.eq.s32.totalorder %s15, 0
    %p63 = por %p61, %p62
    %s65 = sadd.s32 %s64, 1
    %p68 = scmp.eq.s32.totalorder %s9, 1
    %p69 = scmp.ne.s32.totalorder %s64, %s66
    %p70 = scmp.eq.s32.totalorder %s9, 0
    %p71 = por %p69, %p70
    %p72 = scmp.ne.s32.totalorder %s64, %s66
    %p73 = scmp.eq.s32.totalorder %s14, 1
    %p74 = por %p72, %p73
    %p75 = scmp.ne.s32.totalorder %s66, %s67
    %p76 = scmp.eq.s32.totalorder %s14, 0
    %p77 = por %p75, %p76
    %p78 = scmp.ne.s32.totalorder %s66, %s67
    %p79 = scmp.eq.s32.totalorder %s15, 1
    %p80 = por %p78, %p79
    %p82 = scmp.ne.s32.totalorder %s67, %s81
    %p83 = scmp.eq.s32.totalorder %s15, 0
    %p84 = por %p82, %p83
    %s85 = ssub.s32 %s9, %s16
    %p86 = scmp.eq.s32.totalorder %s85, 0
    %s88 = sadd.s32 %s87, 1
    %s89 = scalar_select %p86, %s87, %s88
    %p92 = pneg %p86
    %p93 = scmp.eq.s32.totalorder %s9, 1
    %p94 = por %p92, %p93
    %p95 = scmp.ne.s32.totalorder %s87, %s90
    %p96 = scmp.eq.s32.totalorder %s9, 0
    %p97 = por %p95, %p96
    %p98 = scmp.ne.s32.totalorder %s87, %s90
    %p99 = scmp.eq.s32.totalorder %s14, 1
    %p100 = por %p98, %p99
    %p101 = scmp.ne.s32.totalorder %s90, %s91
    %p102 = scmp.eq.s32.totalorder %s14, 0
    %p103 = por %p101, %p102
    %p104 = scmp.ne.s32.totalorder %s90, %s91
    %p105 = scmp.eq.s32.totalorder %s15, 1
    %p106 = por %p104, %p105
    %p108 = scmp.ne.s32.totalorder %s91, %s107
    %p109 = scmp.eq.s32.totalorder %s15, 0
    %p110 = por %p108, %p109
    %p111 = scmp.le.s32.totalorder 1, %s9
    %p112 = scmp.lt.s32.totalorder %s9, 3
    %p113 = pnand %p111, %p112
    %p114 = pneg %p113
    // Predicated region
    $region9: #{tpu_custom_call.1} parent=5 // pred_check
      _
    $region10: #{tpu_custom_call.1} parent=5 // pred_check_branch
      %116 = sbr.rel (%p113) target = $region12
    $region11: #{tpu_custom_call.1} parent=5 // pred_region
      %s117 = ssub.s32 %s9, 1
      // Predicated region
      $region13: #{tpu_custom_call.1} parent=11 // pred_check
        %p118 = pneg %p56
      $region14: #{tpu_custom_call.1} parent=11 // pred_check_branch
        %120 = sbr.rel (%p118) target = $region16
      $region15: #{tpu_custom_call.1} parent=11 // pred_region
        _
      $region16: #{tpu_custom_call.1} parent=11 // pred_fallthru
        _
      // Predicated region
      $region17: #{tpu_custom_call.1} parent=11 // pred_check
        %p121 = pneg %p77
      $region18: #{tpu_custom_call.1} parent=11 // pred_check_branch
        %123 = sbr.rel (%p121) target = $region20
      $region19: #{tpu_custom_call.1} parent=11 // pred_region
        _
      $region20: #{tpu_custom_call.1} parent=11 // pred_fallthru
        _
    $region12: #{tpu_custom_call.1} parent=5 // pred_fallthru
      _
    %p124 = scmp.lt.s32.totalorder %s9, 2
    // Predicated region
    $region21: #{tpu_custom_call.1} parent=5 // pred_check
      %p125 = pneg %p124
    $region22: #{tpu_custom_call.1} parent=5 // pred_check_branch
      %127 = sbr.rel (%p125) target = $region24
    $region23: #{tpu_custom_call.1} parent=5 // pred_region
      // Predicated region
      $region25: #{tpu_custom_call.1} parent=23 // pred_check
        %p128 = pneg %p29
      $region26: #{tpu_custom_call.1} parent=23 // pred_check_branch
        %130 = sbr.rel (%p128) target = $region28
      $region27: #{tpu_custom_call.1} parent=23 // pred_region
        %s131 = smul.u32 64, %s9
        %p132 = scmp.lt.s32.totalorder %s131, 127
        %s133 = scalar_select %p132, %s131, 127
        %s134 = smul.addr %s133, 8
        %s135 = scalar_lea.vmem %s0, %s134
        %s136 = smul.u32 64, %s9
      $region28: #{tpu_custom_call.1} parent=23 // pred_fallthru
        _
    $region24: #{tpu_custom_call.1} parent=5 // pred_fallthru
      _
    %p137 = scmp.le.s32.totalorder 1, %s9
    %p138 = scmp.lt.s32.totalorder %s9, 3
    %p139 = pnand %p137, %p138
    %p140 = pneg %p139
    // Predicated region
    $region29: #{tpu_custom_call.1} parent=5 // pred_check
      _
    $region30: #{tpu_custom_call.1} parent=5 // pred_check_branch
      %142 = sbr.rel (%p139) target = $region32
    $region31: #{tpu_custom_call.1} parent=5 // pred_region
      %s143 = ssub.s32 %s9, 1
      %s144 = smul.u32 64, %s14
      %p145 = scmp.lt.s32.totalorder %s144, 127
      %s146 = scalar_select %p145, %s144, 127
      %s147 = smul.addr %s146, 8
      %s148 = scalar_lea.vmem %s0, %s147
      %p149 = pneg %p35
      %p150 = pneg %p32
      %p151 = pneg %p56
      %p152 = pneg %p53
      %p153 = pneg %p77
      %p154 = pneg %p74
      %p155 = pneg %p103
      %p156 = pneg %p100
      %s157 = smul.u32 64, %s14
      %p158 = scmp.lt.s32.totalorder %s157, 127
      %s159 = scalar_select %p158, %s157, 127
      %s160 = smul.addr %s159, 8
      %s161 = scalar_lea.vmem %s3, %s160
      %s162 = smul.u32 64, %s14
      %p163 = scmp.lt.s32.totalorder %s162, 127
      %s164 = scalar_select %p163, %s162, 127
      %s165 = smul.addr %s164, 8
      %s166 = scalar_lea.vmem %s0, %s165
      %s167 = smul.u32 64, %s14
      %s168 = smul.u32 64, %s14
      %p169 = scmp.lt.s32.totalorder %s168, 127
      %s170 = scalar_select %p169, %s168, 127
      %s171 = smul.addr %s170, 8
      %s172 = scalar_lea.vmem %s3, %s171
      %s173 = smul.u32 64, %s14
      %v174 = vld [vmem:[%s166] sm:$0xff]
      %v175 = vld [vmem:[%s166 + $0x8] sm:$0xff]
      %v176 = vld [vmem:[%s166 + $0x10] sm:$0xff]
      %v177 = vld [vmem:[%s166 + $0x18] sm:$0xff]
      %v178 = vld [vmem:[%s166 + $0x20] sm:$0xff]
      %v179 = vld [vmem:[%s166 + $0x28] sm:$0xff]
      %v180 = vld [vmem:[%s166 + $0x30] sm:$0xff]
      %v181 = vld [vmem:[%s166 + $0x38] sm:$0xff]
      %v182 = vld [vmem:[%s166 + $0x40] sm:$0xff]
      %v183 = vld [vmem:[%s166 + $0x48] sm:$0xff]
      %v184 = vld [vmem:[%s166 + $0x50] sm:$0xff]
      %v185 = vld [vmem:[%s166 + $0x58] sm:$0xff]
      %v186 = vld [vmem:[%s166 + $0x60] sm:$0xff]
      %v187 = vld [vmem:[%s166 + $0x68] sm:$0xff]
      %v188 = vld [vmem:[%s166 + $0x70] sm:$0xff]
      %v189 = vld [vmem:[%s166 + $0x78] sm:$0xff]
      %v190 = vld [vmem:[%s166 + $0x80] sm:$0xff]
      %v191 = vld [vmem:[%s166 + $0x88] sm:$0xff]
      %v192 = vld [vmem:[%s166 + $0x90] sm:$0xff]
      %v193 = vld [vmem:[%s166 + $0x98] sm:$0xff]
      %v194 = vld [vmem:[%s166 + $0xa0] sm:$0xff]
      %v195 = vld [vmem:[%s166 + $0xa8] sm:$0xff]
      %v196 = vld [vmem:[%s166 + $0xb0] sm:$0xff]
      %v197 = vld [vmem:[%s166 + $0xb8] sm:$0xff]
      %v198 = vld [vmem:[%s166 + $0xc0] sm:$0xff]
      %v199 = vld [vmem:[%s166 + $0xc8] sm:$0xff]
      %v200 = vld [vmem:[%s166 + $0xd0] sm:$0xff]
      %v201 = vld [vmem:[%s166 + $0xd8] sm:$0xff]
      %v202 = vld [vmem:[%s166 + $0xe0] sm:$0xff]
      %v203 = vld [vmem:[%s166 + $0xe8] sm:$0xff]
      %v204 = vld [vmem:[%s166 + $0xf0] sm:$0xff]
      %v205 = vld [vmem:[%s166 + $0xf8] sm:$0xff]
      %v206 = vld [vmem:[%s166 + $0x100] sm:$0xff]
      %v207 = vld [vmem:[%s166 + $0x108] sm:$0xff]
      %v208 = vld [vmem:[%s166 + $0x110] sm:$0xff]
      %v209 = vld [vmem:[%s166 + $0x118] sm:$0xff]
      %v210 = vld [vmem:[%s166 + $0x120] sm:$0xff]
      %v211 = vld [vmem:[%s166 + $0x128] sm:$0xff]
      %v212 = vld [vmem:[%s166 + $0x130] sm:$0xff]
      %v213 = vld [vmem:[%s166 + $0x138] sm:$0xff]
      %v214 = vld [vmem:[%s166 + $0x140] sm:$0xff]
      %v215 = vld [vmem:[%s166 + $0x148] sm:$0xff]
      %v216 = vld [vmem:[%s166 + $0x150] sm:$0xff]
      %v217 = vld [vmem:[%s166 + $0x158] sm:$0xff]
      %v218 = vld [vmem:[%s166 + $0x160] sm:$0xff]
      %v219 = vld [vmem:[%s166 + $0x168] sm:$0xff]
      %v220 = vld [vmem:[%s166 + $0x170] sm:$0xff]
      %v221 = vld [vmem:[%s166 + $0x178] sm:$0xff]
      %v222 = vld [vmem:[%s166 + $0x180] sm:$0xff]
      %v223 = vld [vmem:[%s166 + $0x188] sm:$0xff]
      %v224 = vld [vmem:[%s166 + $0x190] sm:$0xff]
      %v225 = vld [vmem:[%s166 + $0x198] sm:$0xff]
      %v226 = vld [vmem:[%s166 + $0x1a0] sm:$0xff]
      %v227 = vld [vmem:[%s166 + $0x1a8] sm:$0xff]
      %v228 = vld [vmem:[%s166 + $0x1b0] sm:$0xff]
      %v229 = vld [vmem:[%s166 + $0x1b8] sm:$0xff]
      %v230 = vld [vmem:[%s166 + $0x1c0] sm:$0xff]
      %v231 = vld [vmem:[%s166 + $0x1c8] sm:$0xff]
      %v232 = vld [vmem:[%s166 + $0x1d0] sm:$0xff]
      %v233 = vld [vmem:[%s166 + $0x1d8] sm:$0xff]
      %v234 = vld [vmem:[%s166 + $0x1e0] sm:$0xff]
      %v235 = vld [vmem:[%s166 + $0x1e8] sm:$0xff]
      %v236 = vld [vmem:[%s166 + $0x1f0] sm:$0xff]
      %v237 = vld [vmem:[%s166 + $0x1f8] sm:$0xff]
      %v238 = vld [vmem:[%s1] sm:$0xff]
      %v239 = vld [vmem:[%s2] sm:$0x1]
      %v241 = vlaneseq
      %v242 = vshrl.u32 %v241, 7
      %v243 = vsub.s32 0, %v242
      %v244 = vrot.slane %v239, %v243
      %vm246 = vcmask 64512
      %v248 = vsel %vm246, %v174, 0
      %v251 = vsel %vm246, %v175, 0
      %v254 = vsel %vm246, %v176, 0
      %v257 = vsel %vm246, %v177, 0
      %v260 = vsel %vm246, %v178, 0
      %v263 = vsel %vm246, %v179, 0
      %v266 = vsel %vm246, %v180, 0
      %v269 = vsel %vm246, %v181, 0
      %v272 = vsel %vm246, %v182, 0
      %v275 = vsel %vm246, %v183, 0
      %v278 = vsel %vm246, %v184, 0
      %v281 = vsel %vm246, %v185, 0
      %v284 = vsel %vm246, %v186, 0
      %v287 = vsel %vm246, %v187, 0
      %v290 = vsel %vm246, %v188, 0
      %v293 = vsel %vm246, %v189, 0
      %v296 = vsel %vm246, %v190, 0
      %v299 = vsel %vm246, %v191, 0
      %v302 = vsel %vm246, %v192, 0
      %v305 = vsel %vm246, %v193, 0
      %v308 = vsel %vm246, %v194, 0
      %v311 = vsel %vm246, %v195, 0
      %v314 = vsel %vm246, %v196, 0
      %v317 = vsel %vm246, %v197, 0
      %v320 = vsel %vm246, %v198, 0
      %v323 = vsel %vm246, %v199, 0
      %v326 = vsel %vm246, %v200, 0
      %v329 = vsel %vm246, %v201, 0
      %v332 = vsel %vm246, %v202, 0
      %v335 = vsel %vm246, %v203, 0
      %v338 = vsel %vm246, %v204, 0
      %v341 = vsel %vm246, %v205, 0
      %v344 = vsel %vm246, %v206, 0
      %v347 = vsel %vm246, %v207, 0
      %v350 = vsel %vm246, %v208, 0
      %v353 = vsel %vm246, %v209, 0
      %v356 = vsel %vm246, %v210, 0
      %v359 = vsel %vm246, %v211, 0
      %v362 = vsel %vm246, %v212, 0
      %v365 = vsel %vm246, %v213, 0
      %v368 = vsel %vm246, %v214, 0
      %v371 = vsel %vm246, %v215, 0
      %v374 = vsel %vm246, %v216, 0
      %v377 = vsel %vm246, %v217, 0
      %v380 = vsel %vm246, %v218, 0
      %v383 = vsel %vm246, %v219, 0
      %v386 = vsel %vm246, %v220, 0
      %v389 = vsel %vm246, %v221, 0
      %v392 = vsel %vm246, %v222, 0
      %v395 = vsel %vm246, %v223, 0
      %v398 = vsel %vm246, %v224, 0
      %v401 = vsel %vm246, %v225, 0
      %v404 = vsel %vm246, %v226, 0
      %v407 = vsel %vm246, %v227, 0
      %v410 = vsel %vm246, %v228, 0
      %v413 = vsel %vm246, %v229, 0
      %v416 = vsel %vm246, %v230, 0
      %v419 = vsel %vm246, %v231, 0
      %v422 = vsel %vm246, %v232, 0
      %v425 = vsel %vm246, %v233, 0
      %v428 = vsel %vm246, %v234, 0
      %v431 = vsel %vm246, %v235, 0
      %v434 = vsel %vm246, %v236, 0
      %v437 = vsel %vm246, %v237, 0
      %439 = vmatprep.subr.mxu0 0.0
      %440 = vmatpush1.msra.mxu0 %v238
      %441 = vmatprep.subr.mxu0 0.0
      %442 = vmatpush1.msra.mxu0 0.0
      %443 = vmatprep.subr.mxu0 0.0
      %444 = vmatpush1.msra.mxu0 0.0
      %445 = vmatprep.subr.mxu0 0.0
      %446 = vmatpush1.msra.mxu0 0.0
      %447 = vmatprep.subr.mxu0 0.0
      %448 = vmatpush1.msra.mxu0 0.0
      %449 = vmatprep.subr.mxu0 0.0
      %450 = vmatpush1.msra.mxu0 0.0
      %451 = vmatprep.subr.mxu0 0.0
      %452 = vmatpush1.msra.mxu0 0.0
      %453 = vmatprep.subr.mxu0 0.0
      %454 = vmatpush1.msra.mxu0 0.0
      %455 = vmatprep.subr.mxu0 0.0
      %456 = vmatpush1.msra.mxu0 0.0
      %457 = vmatprep.subr.mxu0 0.0
      %458 = vmatpush1.msra.mxu0 0.0
      %459 = vmatprep.subr.mxu0 0.0
      %460 = vmatpush1.msra.mxu0 0.0
      %461 = vmatprep.subr.mxu0 0.0
      %462 = vmatpush1.msra.mxu0 0.0
      %463 = vmatprep.subr.mxu0 0.0
      %464 = vmatpush1.msra.mxu0 0.0
      %465 = vmatprep.subr.mxu0 0.0
      %466 = vmatpush1.msra.mxu0 0.0
      %467 = vmatprep.subr.mxu0 0.0
      %468 = vmatpush1.msra.mxu0 0.0
      %469 = vmatprep.subr.mxu0 0.0
      %470 = vmatpush1.msra.mxu0 0.0
      %471 = vmatprep.subr.mxu0 0.0
      %472 = vmatpush1.msra.mxu0 0.0
      %473 = vmatprep.subr.mxu0 0.0
      %474 = vmatpush1.msra.mxu0 0.0
      %475 = vmatprep.subr.mxu0 0.0
      %476 = vmatpush1.msra.mxu0 0.0
      %477 = vmatprep.subr.mxu0 0.0
      %478 = vmatpush1.msra.mxu0 0.0
      %479 = vmatprep.subr.mxu0 0.0
      %480 = vmatpush1.msra.mxu0 0.0
      %481 = vmatprep.subr.mxu0 0.0
      %482 = vmatpush1.msra.mxu0 0.0
      %483 = vmatprep.subr.mxu0 0.0
      %484 = vmatpush1.msra.mxu0 0.0
      %485 = vmatprep.subr.mxu0 0.0
      %486 = vmatpush1.msra.mxu0 0.0
      %487 = vmatprep.subr.mxu0 0.0
      %488 = vmatpush1.msra.mxu0 0.0
      %489 = vmatprep.subr.mxu0 0.0
      %490 = vmatpush1.msra.mxu0 0.0
      %491 = vmatprep.subr.mxu0 0.0
      %492 = vmatpush1.msra.mxu0 0.0
      %493 = vmatprep.subr.mxu0 0.0
      %494 = vmatpush1.msra.mxu0 0.0
      %495 = vmatprep.subr.mxu0 0.0
      %496 = vmatpush1.msra.mxu0 0.0
      %497 = vmatprep.subr.mxu0 0.0
      %498 = vmatpush1.msra.mxu0 0.0
      %499 = vmatprep.subr.mxu0 0.0
      %500 = vmatpush1.msra.mxu0 0.0
      %501 = vmatprep.subr.mxu0 0.0
      %502 = vmatpush1.msra.mxu0 0.0
      %503 = vmatprep.mubr.f32.mxu0 0.0
      %504 = vmatmul.mubr.f32.gmra.mrb[0].mxu0 %v248
      %v505 = vpop.f32.mrb[0].mxu0
      %v506 = vadd.f32 %v244, %v505
      %v507 = vpop.f32.mrb[0].mxu0
      %508 = vmatprep.mubr.f32.mxu0 0.0
      %509 = vmatmul.mubr.f32.gmra.mrb[0].mxu0 %v251
      %v510 = vpop.f32.mrb[0].mxu0
      %v511 = vadd.f32 %v244, %v510
      %v512 = vpop.f32.mrb[0].mxu0
      %513 = vmatprep.mubr.f32.mxu0 0.0
      %514 = vmatmul.mubr.f32.gmra.mrb[0].mxu0 %v254
      %v515 = vpop.f32.mrb[0].mxu0
      %v516 = vadd.f32 %v244, %v515
      %v517 = vpop.f32.mrb[0].mxu0
      %518 = vmatprep.mubr.f32.mxu0 0.0
      %519 = vmatmul.mubr.f32.gmra.mrb[0].mxu0 %v257
      %v520 = vpop.f32.mrb[0].mxu0
      %v521 = vadd.f32 %v244, %v520
      %v522 = vpop.f32.mrb[0].mxu0
      %523 = vmatprep.mubr.f32.mxu0 0.0
      %524 = vmatmul.mubr.f32.gmra.mrb[0].mxu0 %v260
      %v525 = vpop.f32.mrb[0].mxu0
      %v526 = vadd.f32 %v244, %v525
      %v527 = vpop.f32.mrb[0].mxu0
      %528 = vmatprep.mubr.f32.mxu0 0.0
      %529 = vmatmul.mubr.f32.gmra.mrb[0].mxu0 %v263
      %v530 = vpop.f32.mrb[0].mxu0
      %v531 = vadd.f32 %v244, %v530
      %v532 = vpop.f32.mrb[0].mxu0
      %533 = vmatprep.mubr.f32.mxu0 0.0
      %534 = vmatmul.mubr.f32.gmra.mrb[0].mxu0 %v266
      %v535 = vpop.f32.mrb[0].mxu0
      %v536 = vadd.f32 %v244, %v535
      %v537 = vpop.f32.mrb[0].mxu0
      %538 = vmatprep.mubr.f32.mxu0 0.0
      %539 = vmatmul.mubr.f32.gmra.mrb[0].mxu0 %v269
      %v540 = vpop.f32.mrb[0].mxu0
      %v541 = vadd.f32 %v244, %v540
      %v542 = vpop.f32.mrb[0].mxu0
      %543 = vmatprep.mubr.f32.mxu0 0.0
      %544 = vmatmul.mubr.f32.gmra.mrb[0].mxu0 %v272
      %v545 = vpop.f32.mrb[0].mxu0
      %v546 = vadd.f32 %v244, %v545
      %v547 = vpop.f32.mrb[0].mxu0
      %548 = vmatprep.mubr.f32.mxu0 0.0
      %549 = vmatmul.mubr.f32.gmra.mrb[0].mxu0 %v275
      %v550 = vpop.f32.mrb[0].mxu0
      %v551 = vadd.f32 %v244, %v550
      %v552 = vpop.f32.mrb[0].mxu0
      %553 = vmatprep.mubr.f32.mxu0 0.0
      %554 = vmatmul.mubr.f32.gmra.mrb[0].mxu0 %v278
      %v555 = vpop.f32.mrb[0].mxu0
      %v556 = vadd.f32 %v244, %v555
      %v557 = vpop.f32.mrb[0].mxu0
      %558 = vmatprep.mubr.f32.mxu0 0.0
      %559 = vmatmul.mubr.f32.gmra.mrb[0].mxu0 %v281
      %v560 = vpop.f32.mrb[0].mxu0
      %v561 = vadd.f32 %v244, %v560
      %v562 = vpop.f32.mrb[0].mxu0
      %563 = vmatprep.mubr.f32.mxu0 0.0
      %564 = vmatmul.mubr.f32.gmra.mrb[0].mxu0 %v284
      %v565 = vpop.f32.mrb[0].mxu0
      %v566 = vadd.f32 %v244, %v565
      %v567 = vpop.f32.mrb[0].mxu0
      %568 = vmatprep.mubr.f32.mxu0 0.0
      %569 = vmatmul.mubr.f32.gmra.mrb[0].mxu0 %v287
      %v570 = vpop.f32.mrb[0].mxu0
      %v571 = vadd.f32 %v244, %v570
      %v572 = vpop.f32.mrb[0].mxu0
      %573 = vmatprep.mubr.f32.mxu0 0.0
      %574 = vmatmul.mubr.f32.gmra.mrb[0].mxu0 %v290
      %v575 = vpop.f32.mrb[0].mxu0
      %v576 = vadd.f32 %v244, %v575
      %v577 = vpop.f32.mrb[0].mxu0
      %578 = vmatprep.mubr.f32.mxu0 0.0
      %579 = vmatmul.mubr.f32.gmra.mrb[0].mxu0 %v293
      %v580 = vpop.f32.mrb[0].mxu0
      %v581 = vadd.f32 %v244, %v580
      %v582 = vpop.f32.mrb[0].mxu0
      %583 = vmatprep.mubr.f32.mxu0 0.0
      %584 = vmatmul.mubr.f32.gmra.mrb[0].mxu0 %v296
      %v585 = vpop.f32.mrb[0].mxu0
      %v586 = vadd.f32 %v244, %v585
      %v587 = vpop.f32.mrb[0].mxu0
      %588 = vmatprep.mubr.f32.mxu0 0.0
      %589 = vmatmul.mubr.f32.gmra.mrb[0].mxu0 %v299
      %v590 = vpop.f32.mrb[0].mxu0
      %v591 = vadd.f32 %v244, %v590
      %v592 = vpop.f32.mrb[0].mxu0
      %593 = vmatprep.mubr.f32.mxu0 0.0
      %594 = vmatmul.mubr.f32.gmra.mrb[0].mxu0 %v302
      %v595 = vpop.f32.mrb[0].mxu0
      %v596 = vadd.f32 %v244, %v595
      %v597 = vpop.f32.mrb[0].mxu0
      %598 = vmatprep.mubr.f32.mxu0 0.0
      %599 = vmatmul.mubr.f32.gmra.mrb[0].mxu0 %v305
      %v600 = vpop.f32.mrb[0].mxu0
      %v601 = vadd.f32 %v244, %v600
      %v602 = vpop.f32.mrb[0].mxu0
      %603 = vmatprep.mubr.f32.mxu0 0.0
      %604 = vmatmul.mubr.f32.gmra.mrb[0].mxu0 %v308
      %v605 = vpop.f32.mrb[0].mxu0
      %v606 = vadd.f32 %v244, %v605
      %v607 = vpop.f32.mrb[0].mxu0
      %608 = vmatprep.mubr.f32.mxu0 0.0
      %609 = vmatmul.mubr.f32.gmra.mrb[0].mxu0 %v311
      %v610 = vpop.f32.mrb[0].mxu0
      %v611 = vadd.f32 %v244, %v610
      %v612 = vpop.f32.mrb[0].mxu0
      %613 = vmatprep.mubr.f32.mxu0 0.0
      %614 = vmatmul.mubr.f32.gmra.mrb[0].mxu0 %v314
      %v615 = vpop.f32.mrb[0].mxu0
      %v616 = vadd.f32 %v244, %v615
      %v617 = vpop.f32.mrb[0].mxu0
      %618 = vmatprep.mubr.f32.mxu0 0.0
      %619 = vmatmul.mubr.f32.gmra.mrb[0].mxu0 %v317
      %v620 = vpop.f32.mrb[0].mxu0
      %v621 = vadd.f32 %v244, %v620
      %v622 = vpop.f32.mrb[0].mxu0
      %623 = vmatprep.mubr.f32.mxu0 0.0
      %624 = vmatmul.mubr.f32.gmra.mrb[0].mxu0 %v320
      %v625 = vpop.f32.mrb[0].mxu0
      %v626 = vadd.f32 %v244, %v625
      %v627 = vpop.f32.mrb[0].mxu0
      %628 = vmatprep.mubr.f32.mxu0 0.0
      %629 = vmatmul.mubr.f32.gmra.mrb[0].mxu0 %v323
      %v630 = vpop.f32.mrb[0].mxu0
      %v631 = vadd.f32 %v244, %v630
      %v632 = vpop.f32.mrb[0].mxu0
      %633 = vmatprep.mubr.f32.mxu0 0.0
      %634 = vmatmul.mubr.f32.gmra.mrb[0].mxu0 %v326
      %v635 = vpop.f32.mrb[0].mxu0
      %v636 = vadd.f32 %v244, %v635
      %v637 = vpop.f32.mrb[0].mxu0
      %638 = vmatprep.mubr.f32.mxu0 0.0
      %639 = vmatmul.mubr.f32.gmra.mrb[0].mxu0 %v329
      %v640 = vpop.f32.mrb[0].mxu0
      %v641 = vadd.f32 %v244, %v640
      %v642 = vpop.f32.mrb[0].mxu0
      %643 = vmatprep.mubr.f32.mxu0 0.0
      %644 = vmatmul.mubr.f32.gmra.mrb[0].mxu0 %v332
      %v645 = vpop.f32.mrb[0].mxu0
      %v646 = vadd.f32 %v244, %v645
      %v647 = vpop.f32.mrb[0].mxu0
      %648 = vmatprep.mubr.f32.mxu0 0.0
      %649 = vmatmul.mubr.f32.gmra.mrb[0].mxu0 %v335
      %v650 = vpop.f32.mrb[0].mxu0
      %v651 = vadd.f32 %v244, %v650
      %v652 = vpop.f32.mrb[0].mxu0
      %653 = vmatprep.mubr.f32.mxu0 0.0
      %654 = vmatmul.mubr.f32.gmra.mrb[0].mxu0 %v338
      %v655 = vpop.f32.mrb[0].mxu0
      %v656 = vadd.f32 %v244, %v655
      %v657 = vpop.f32.mrb[0].mxu0
      %658 = vmatprep.mubr.f32.mxu0 0.0
      %659 = vmatmul.mubr.f32.gmra.mrb[0].mxu0 %v341
      %v660 = vpop.f32.mrb[0].mxu0
      %v661 = vadd.f32 %v244, %v660
      %v662 = vpop.f32.mrb[0].mxu0
      %663 = vmatprep.mubr.f32.mxu0 0.0
      %664 = vmatmul.mubr.f32.gmra.mrb[0].mxu0 %v344
      %v665 = vpop.f32.mrb[0].mxu0
      %v666 = vadd.f32 %v244, %v665
      %v667 = vpop.f32.mrb[0].mxu0
      %668 = vmatprep.mubr.f32.mxu0 0.0
      %669 = vmatmul.mubr.f32.gmra.mrb[0].mxu0 %v347
      %v670 = vpop.f32.mrb[0].mxu0
      %v671 = vadd.f32 %v244, %v670
      %v672 = vpop.f32.mrb[0].mxu0
      %673 = vmatprep.mubr.f32.mxu0 0.0
      %674 = vmatmul.mubr.f32.gmra.mrb[0].mxu0 %v350
      %v675 = vpop.f32.mrb[0].mxu0
      %v676 = vadd.f32 %v244, %v675
      %v677 = vpop.f32.mrb[0].mxu0
      %678 = vmatprep.mubr.f32.mxu0 0.0
      %679 = vmatmul.mubr.f32.gmra.mrb[0].mxu0 %v353
      %v680 = vpop.f32.mrb[0].mxu0
      %v681 = vadd.f32 %v244, %v680
      %v682 = vpop.f32.mrb[0].mxu0
      %683 = vmatprep.mubr.f32.mxu0 0.0
      %684 = vmatmul.mubr.f32.gmra.mrb[0].mxu0 %v356
      %v685 = vpop.f32.mrb[0].mxu0
      %v686 = vadd.f32 %v244, %v685
      %v687 = vpop.f32.mrb[0].mxu0
      %688 = vmatprep.mubr.f32.mxu0 0.0
      %689 = vmatmul.mubr.f32.gmra.mrb[0].mxu0 %v359
      %v690 = vpop.f32.mrb[0].mxu0
      %v691 = vadd.f32 %v244, %v690
      %v692 = vpop.f32.mrb[0].mxu0
      %693 = vmatprep.mubr.f32.mxu0 0.0
      %694 = vmatmul.mubr.f32.gmra.mrb[0].mxu0 %v362
      %v695 = vpop.f32.mrb[0].mxu0
      %v696 = vadd.f32 %v244, %v695
      %v697 = vpop.f32.mrb[0].mxu0
      %698 = vmatprep.mubr.f32.mxu0 0.0
      %699 = vmatmul.mubr.f32.gmra.mrb[0].mxu0 %v365
      %v700 = vpop.f32.mrb[0].mxu0
      %v701 = vadd.f32 %v244, %v700
      %v702 = vpop.f32.mrb[0].mxu0
      %703 = vmatprep.mubr.f32.mxu0 0.0
      %704 = vmatmul.mubr.f32.gmra.mrb[0].mxu0 %v368
      %v705 = vpop.f32.mrb[0].mxu0
      %v706 = vadd.f32 %v244, %v705
      %v707 = vpop.f32.mrb[0].mxu0
      %708 = vmatprep.mubr.f32.mxu0 0.0
      %709 = vmatmul.mubr.f32.gmra.mrb[0].mxu0 %v371
      %v710 = vpop.f32.mrb[0].mxu0
      %v711 = vadd.f32 %v244, %v710
      %v712 = vpop.f32.mrb[0].mxu0
      %713 = vmatprep.mubr.f32.mxu0 0.0
      %714 = vmatmul.mubr.f32.gmra.mrb[0].mxu0 %v374
      %v715 = vpop.f32.mrb[0].mxu0
      %v716 = vadd.f32 %v244, %v715
      %v717 = vpop.f32.mrb[0].mxu0
      %718 = vmatprep.mubr.f32.mxu0 0.0
      %719 = vmatmul.mubr.f32.gmra.mrb[0].mxu0 %v377
      %v720 = vpop.f32.mrb[0].mxu0
      %v721 = vadd.f32 %v244, %v720
      %v722 = vpop.f32.mrb[0].mxu0
      %723 = vmatprep.mubr.f32.mxu0 0.0
      %724 = vmatmul.mubr.f32.gmra.mrb[0].mxu0 %v380
      %v725 = vpop.f32.mrb[0].mxu0
      %v726 = vadd.f32 %v244, %v725
      %v727 = vpop.f32.mrb[0].mxu0
      %728 = vmatprep.mubr.f32.mxu0 0.0
      %729 = vmatmul.mubr.f32.gmra.mrb[0].mxu0 %v383
      %v730 = vpop.f32.mrb[0].mxu0
      %v731 = vadd.f32 %v244, %v730
      %v732 = vpop.f32.mrb[0].mxu0
      %733 = vmatprep.mubr.f32.mxu0 0.0
      %734 = vmatmul.mubr.f32.gmra.mrb[0].mxu0 %v386
      %v735 = vpop.f32.mrb[0].mxu0
      %v736 = vadd.f32 %v244, %v735
      %v737 = vpop.f32.mrb[0].mxu0
      %738 = vmatprep.mubr.f32.mxu0 0.0
      %739 = vmatmul.mubr.f32.gmra.mrb[0].mxu0 %v389
      %v740 = vpop.f32.mrb[0].mxu0
      %v741 = vadd.f32 %v244, %v740
      %v742 = vpop.f32.mrb[0].mxu0
      %743 = vmatprep.mubr.f32.mxu0 0.0
      %744 = vmatmul.mubr.f32.gmra.mrb[0].mxu0 %v392
      %v745 = vpop.f32.mrb[0].mxu0
      %v746 = vadd.f32 %v244, %v745
      %v747 = vpop.f32.mrb[0].mxu0
      %748 = vmatprep.mubr.f32.mxu0 0.0
      %749 = vmatmul.mubr.f32.gmra.mrb[0].mxu0 %v395
      %v750 = vpop.f32.mrb[0].mxu0
      %v751 = vadd.f32 %v244, %v750
      %v752 = vpop.f32.mrb[0].mxu0
      %753 = vmatprep.mubr.f32.mxu0 0.0
      %754 = vmatmul.mubr.f32.gmra.mrb[0].mxu0 %v398
      %v755 = vpop.f32.mrb[0].mxu0
      %v756 = vadd.f32 %v244, %v755
      %v757 = vpop.f32.mrb[0].mxu0
      %758 = vmatprep.mubr.f32.mxu0 0.0
      %759 = vmatmul.mubr.f32.gmra.mrb[0].mxu0 %v401
      %v760 = vpop.f32.mrb[0].mxu0
      %v761 = vadd.f32 %v244, %v760
      %v762 = vpop.f32.mrb[0].mxu0
      %763 = vmatprep.mubr.f32.mxu0 0.0
      %764 = vmatmul.mubr.f32.gmra.mrb[0].mxu0 %v404
      %v765 = vpop.f32.mrb[0].mxu0
      %v766 = vadd.f32 %v244, %v765
      %v767 = vpop.f32.mrb[0].mxu0
      %768 = vmatprep.mubr.f32.mxu0 0.0
      %769 = vmatmul.mubr.f32.gmra.mrb[0].mxu0 %v407
      %v770 = vpop.f32.mrb[0].mxu0
      %v771 = vadd.f32 %v244, %v770
      %v772 = vpop.f32.mrb[0].mxu0
      %773 = vmatprep.mubr.f32.mxu0 0.0
      %774 = vmatmul.mubr.f32.gmra.mrb[0].mxu0 %v410
      %v775 = vpop.f32.mrb[0].mxu0
      %v776 = vadd.f32 %v244, %v775
      %v777 = vpop.f32.mrb[0].mxu0
      %778 = vmatprep.mubr.f32.mxu0 0.0
      %779 = vmatmul.mubr.f32.gmra.mrb[0].mxu0 %v413
      %v780 = vpop.f32.mrb[0].mxu0
      %v781 = vadd.f32 %v244, %v780
      %v782 = vpop.f32.mrb[0].mxu0
      %783 = vmatprep.mubr.f32.mxu0 0.0
      %784 = vmatmul.mubr.f32.gmra.mrb[0].mxu0 %v416
      %v785 = vpop.f32.mrb[0].mxu0
      %v786 = vadd.f32 %v244, %v785
      %v787 = vpop.f32.mrb[0].mxu0
      %788 = vmatprep.mubr.f32.mxu0 0.0
      %789 = vmatmul.mubr.f32.gmra.mrb[0].mxu0 %v419
      %v790 = vpop.f32.mrb[0].mxu0
      %v791 = vadd.f32 %v244, %v790
      %v792 = vpop.f32.mrb[0].mxu0
      %793 = vmatprep.mubr.f32.mxu0 0.0
      %794 = vmatmul.mubr.f32.gmra.mrb[0].mxu0 %v422
      %v795 = vpop.f32.mrb[0].mxu0
      %v796 = vadd.f32 %v244, %v795
      %v797 = vpop.f32.mrb[0].mxu0
      %798 = vmatprep.mubr.f32.mxu0 0.0
      %799 = vmatmul.mubr.f32.gmra.mrb[0].mxu0 %v425
      %v800 = vpop.f32.mrb[0].mxu0
      %v801 = vadd.f32 %v244, %v800
      %v802 = vpop.f32.mrb[0].mxu0
      %803 = vmatprep.mubr.f32.mxu0 0.0
      %804 = vmatmul.mubr.f32.gmra.mrb[0].mxu0 %v428
      %v805 = vpop.f32.mrb[0].mxu0
      %v806 = vadd.f32 %v244, %v805
      %v807 = vpop.f32.mrb[0].mxu0
      %808 = vmatprep.mubr.f32.mxu0 0.0
      %809 = vmatmul.mubr.f32.gmra.mrb[0].mxu0 %v431
      %v810 = vpop.f32.mrb[0].mxu0
      %v811 = vadd.f32 %v244, %v810
      %v812 = vpop.f32.mrb[0].mxu0
      %813 = vmatprep.mubr.f32.mxu0 0.0
      %814 = vmatmul.mubr.f32.gmra.mrb[0].mxu0 %v434
      %v815 = vpop.f32.mrb[0].mxu0
      %v816 = vadd.f32 %v244, %v815
      %v817 = vpop.f32.mrb[0].mxu0
      %818 = vmatprep.mubr.f32.mxu0 0.0
      %819 = vmatmul.mubr.f32.gmra.mrb[0].mxu0 %v437
      %v820 = vpop.f32.mrb[0].mxu0
      %v821 = vadd.f32 %v244, %v820
      %v822 = vpop.f32.mrb[0].mxu0
      %823 = vdwg.mxu0
      %vm824 = vcmask 130048
      %825 = vst.msk [vmem:[%s172] sm:$0xff] %vm824, %v506
      %826 = vst.msk [vmem:[%s172 + $0x8] sm:$0xff] %vm824, %v511
      %827 = vst.msk [vmem:[%s172 + $0x10] sm:$0xff] %vm824, %v516
      %828 = vst.msk [vmem:[%s172 + $0x18] sm:$0xff] %vm824, %v521
      %829 = vst.msk [vmem:[%s172 + $0x20] sm:$0xff] %vm824, %v526
      %830 = vst.msk [vmem:[%s172 + $0x28] sm:$0xff] %vm824, %v531
      %831 = vst.msk [vmem:[%s172 + $0x30] sm:$0xff] %vm824, %v536
      %832 = vst.msk [vmem:[%s172 + $0x38] sm:$0xff] %vm824, %v541
      %833 = vst.msk [vmem:[%s172 + $0x40] sm:$0xff] %vm824, %v546
      %834 = vst.msk [vmem:[%s172 + $0x48] sm:$0xff] %vm824, %v551
      %835 = vst.msk [vmem:[%s172 + $0x50] sm:$0xff] %vm824, %v556
      %836 = vst.msk [vmem:[%s172 + $0x58] sm:$0xff] %vm824, %v561
      %837 = vst.msk [vmem:[%s172 + $0x60] sm:$0xff] %vm824, %v566
      %838 = vst.msk [vmem:[%s172 + $0x68] sm:$0xff] %vm824, %v571
      %839 = vst.msk [vmem:[%s172 + $0x70] sm:$0xff] %vm824, %v576
      %840 = vst.msk [vmem:[%s172 + $0x78] sm:$0xff] %vm824, %v581
      %841 = vst.msk [vmem:[%s172 + $0x80] sm:$0xff] %vm824, %v586
      %842 = vst.msk [vmem:[%s172 + $0x88] sm:$0xff] %vm824, %v591
      %843 = vst.msk [vmem:[%s172 + $0x90] sm:$0xff] %vm824, %v596
      %844 = vst.msk [vmem:[%s172 + $0x98] sm:$0xff] %vm824, %v601
      %845 = vst.msk [vmem:[%s172 + $0xa0] sm:$0xff] %vm824, %v606
      %846 = vst.msk [vmem:[%s172 + $0xa8] sm:$0xff] %vm824, %v611
      %847 = vst.msk [vmem:[%s172 + $0xb0] sm:$0xff] %vm824, %v616
      %848 = vst.msk [vmem:[%s172 + $0xb8] sm:$0xff] %vm824, %v621
      %849 = vst.msk [vmem:[%s172 + $0xc0] sm:$0xff] %vm824, %v626
      %850 = vst.msk [vmem:[%s172 + $0xc8] sm:$0xff] %vm824, %v631
      %851 = vst.msk [vmem:[%s172 + $0xd0] sm:$0xff] %vm824, %v636
      %852 = vst.msk [vmem:[%s172 + $0xd8] sm:$0xff] %vm824, %v641
      %853 = vst.msk [vmem:[%s172 + $0xe0] sm:$0xff] %vm824, %v646
      %854 = vst.msk [vmem:[%s172 + $0xe8] sm:$0xff] %vm824, %v651
      %855 = vst.msk [vmem:[%s172 + $0xf0] sm:$0xff] %vm824, %v656
      %856 = vst.msk [vmem:[%s172 + $0xf8] sm:$0xff] %vm824, %v661
      %857 = vst.msk [vmem:[%s172 + $0x100] sm:$0xff] %vm824, %v666
      %858 = vst.msk [vmem:[%s172 + $0x108] sm:$0xff] %vm824, %v671
      %859 = vst.msk [vmem:[%s172 + $0x110] sm:$0xff] %vm824, %v676
      %860 = vst.msk [vmem:[%s172 + $0x118] sm:$0xff] %vm824, %v681
      %861 = vst.msk [vmem:[%s172 + $0x120] sm:$0xff] %vm824, %v686
      %862 = vst.msk [vmem:[%s172 + $0x128] sm:$0xff] %vm824, %v691
      %863 = vst.msk [vmem:[%s172 + $0x130] sm:$0xff] %vm824, %v696
      %864 = vst.msk [vmem:[%s172 + $0x138] sm:$0xff] %vm824, %v701
      %865 = vst.msk [vmem:[%s172 + $0x140] sm:$0xff] %vm824, %v706
      %866 = vst.msk [vmem:[%s172 + $0x148] sm:$0xff] %vm824, %v711
      %867 = vst.msk [vmem:[%s172 + $0x150] sm:$0xff] %vm824, %v716
      %868 = vst.msk [vmem:[%s172 + $0x158] sm:$0xff] %vm824, %v721
      %869 = vst.msk [vmem:[%s172 + $0x160] sm:$0xff] %vm824, %v726
      %870 = vst.msk [vmem:[%s172 + $0x168] sm:$0xff] %vm824, %v731
      %871 = vst.msk [vmem:[%s172 + $0x170] sm:$0xff] %vm824, %v736
      %872 = vst.msk [vmem:[%s172 + $0x178] sm:$0xff] %vm824, %v741
      %873 = vst.msk [vmem:[%s172 + $0x180] sm:$0xff] %vm824, %v746
      %874 = vst.msk [vmem:[%s172 + $0x188] sm:$0xff] %vm824, %v751
      %875 = vst.msk [vmem:[%s172 + $0x190] sm:$0xff] %vm824, %v756
      %876 = vst.msk [vmem:[%s172 + $0x198] sm:$0xff] %vm824, %v761
      %877 = vst.msk [vmem:[%s172 + $0x1a0] sm:$0xff] %vm824, %v766
      %878 = vst.msk [vmem:[%s172 + $0x1a8] sm:$0xff] %vm824, %v771
      %879 = vst.msk [vmem:[%s172 + $0x1b0] sm:$0xff] %vm824, %v776
      %880 = vst.msk [vmem:[%s172 + $0x1b8] sm:$0xff] %vm824, %v781
      %881 = vst.msk [vmem:[%s172 + $0x1c0] sm:$0xff] %vm824, %v786
      %882 = vst.msk [vmem:[%s172 + $0x1c8] sm:$0xff] %vm824, %v791
      %883 = vst.msk [vmem:[%s172 + $0x1d0] sm:$0xff] %vm824, %v796
      %884 = vst.msk [vmem:[%s172 + $0x1d8] sm:$0xff] %vm824, %v801
      %885 = vst.msk [vmem:[%s172 + $0x1e0] sm:$0xff] %vm824, %v806
      %886 = vst.msk [vmem:[%s172 + $0x1e8] sm:$0xff] %vm824, %v811
      %887 = vst.msk [vmem:[%s172 + $0x1f0] sm:$0xff] %vm824, %v816
      %888 = vst.msk [vmem:[%s172 + $0x1f8] sm:$0xff] %vm824, %v821
      %s889 = smul.u32 64, %s14
      %p890 = scmp.lt.s32.totalorder %s889, 127
      %s891 = scalar_select %p890, %s889, 127
      %s892 = smul.addr %s891, 8
      %s893 = scalar_lea.vmem %s3, %s892
      // Predicated region
      $region33: #{tpu_custom_call.1} parent=31 // pred_check
        %p894 = pneg %p100
      $region34: #{tpu_custom_call.1} parent=31 // pred_check_branch
        %896 = sbr.rel (%p894) target = $region36
      $region35: #{tpu_custom_call.1} parent=31 // pred_region
        %s897 = smul.u32 64, %s14
      $region36: #{tpu_custom_call.1} parent=31 // pred_fallthru
        _
    $region32: #{tpu_custom_call.1} parent=5 // pred_fallthru
      _
    %p898 = scmp.le.s32.totalorder 2, %s9
    // Predicated region
    $region37: #{tpu_custom_call.1} parent=5 // pred_check
      %p899 = pneg %p898
    $region38: #{tpu_custom_call.1} parent=5 // pred_check_branch
      %901 = sbr.rel (%p899) target = $region40
    $region39: #{tpu_custom_call.1} parent=5 // pred_region
      %s902 = ssub.s32 %s9, 2
      // Predicated region
      $region41: #{tpu_custom_call.1} parent=39 // pred_check
        %p903 = pneg %p106
      $region42: #{tpu_custom_call.1} parent=39 // pred_check_branch
        %905 = sbr.rel (%p903) target = $region44
      $region43: #{tpu_custom_call.1} parent=39 // pred_region
        %s906 = smul.u32 64, %s15
        %p907 = scmp.lt.s32.totalorder %s906, 127
        %s908 = scalar_select %p907, %s906, 127
        %s909 = smul.addr %s908, 8
        %s910 = scalar_lea.vmem %s3, %s909
      $region44: #{tpu_custom_call.1} parent=39 // pred_fallthru
        _
    $region40: #{tpu_custom_call.1} parent=5 // pred_fallthru
      _
  $region6: #{tpu_custom_call.1} parent=0 // loop_footer
    %s13 = sadd.s32 1, %s9
  $region7: #{tpu_custom_call.1} parent=0 // loop_footer_branch
    %8 = sbr.rel target = $region3
  $region8: #{tpu_custom_call.1} parent=0 // loop_exit
    _

</llo_original>
